<compile_context>
chip_gen: v7x
topology: tpu7x:2x2x1
jax: 0.10.0
libtpu: 0.0.40
codegen_flags: <defaults>
</compile_context>

<pallas_src>
import jax
import jax.numpy as jnp
from jax.experimental import pallas as pl
from jax.experimental.pallas import tpu as pltpu


def _round_up(x, m):
    return ((x + m - 1) // m) * m


def _cdiv(a, b):
    return (a + b - 1) // b


def _vmem_capacity_bytes():
    try:
        return int(pltpu.get_tpu_info().vmem_capacity_bytes)
    except Exception:
        return 64 * 1024 * 1024  # conservative: v7x per-TensorCore VMEM


def _bf16_epilogue_ok():
    # v6e/v7x have a bf16 VPU/EUP path (~2x tanh throughput); v5e and older
    # do not, so keep their epilogue in f32.
    try:
        kind = jax.devices()[0].device_kind.lower()
    except Exception:
        return False
    return not any(old in kind for old in ("v2", "v3", "v4", "v5"))


def _make_kernel(bf16_epilogue):
    def kernel(x_ref, w1_ref, b1_ref, w2_ref, b2_ref, o_ref):
        # x_ref:  (TM, H) native dtype   w1_ref: (H, H)  bf16   b1_ref: (1, H)  f32
        # w2_ref: (H, Lp) bf16           b2_ref: (1, Lp) f32    o_ref:  (TM, Lp) x.dtype
        x = x_ref[...].astype(jnp.bfloat16)          # in-kernel cast, hidden under MXU
        # GEMM 1 on the MXU with f32 accumulation.
        h = jnp.dot(x, w1_ref[...], preferred_element_type=jnp.float32)
        h = h + b1_ref[...]                          # bias add in f32
        if bf16_epilogue:
            h = jnp.tanh(h.astype(jnp.bfloat16))     # bf16 EUP tanh (v6e/v7x)
        else:
            h = jnp.tanh(h).astype(jnp.bfloat16)     # f32 tanh (v5e-safe)
        # GEMM 2: bf16 activations on the MXU, f32 accumulation.
        out = jnp.dot(h, w2_ref[...], preferred_element_type=jnp.float32)
        o_ref[...] = (out + b2_ref[...]).astype(o_ref.dtype)

    return kernel


def bert_mlp(x, w1, b1, w2, b2, *, tm=512):
    """BertMLP forward.

    x:  [B, S, H]
    w1: [H, H]  (in, out) layout, i.e. PyTorch dense_layer.weight.T
    b1: [H]
    w2: [H, L]  (in, out) layout, i.e. PyTorch dense_to_labels_layer.weight.T
    b2: [L]
    returns [B, S, L] in x.dtype.
    """
    B, S, H = x.shape
    L = w2.shape[1]
    M = B * S

    Lp = _round_up(L, 128)          # lane-dense W2 columns / output stores
    out_dtype = x.dtype
    mat_dtype = jnp.bfloat16        # MXU operand dtype (accumulation stays f32)

    # Token slab streamed in its native dtype — no pad / astype HBM round trip.
    x2d = x.reshape(M, H)

    # Weights / biases are tiny relative to the token slab; cast / L-pad here.
    # Padded W2/b2 columns are zero, so padded output columns are exactly zero.
    w1b = w1.astype(mat_dtype)
    b1p = b1.astype(jnp.float32).reshape(1, H)
    w2p = jnp.pad(w2, ((0, 0), (0, Lp - L))).astype(mat_dtype)
    b2p = jnp.pad(b2, (0, Lp - L)).astype(jnp.float32).reshape(1, Lp)

    # Tile size: large for streaming efficiency, clamped to the real row count
    # for tiny inputs, and clamped so the grid has >= 2 steps when there is
    # enough work (v7x has 2 TensorCores; "parallel" shards M across them).
    tm_eff = max(8, min(tm, _round_up(M, 8)))
    if M > 256:
        tm_eff = min(tm_eff, max(256, _round_up(_cdiv(M, 2), 256)))
    grid = (_cdiv(M, tm_eff),)

    # VMEM budget from the actual working set (allow 2x on the resident
    # weights in case single-buffering is unavailable), capped by capacity.
    xb = jnp.dtype(x.dtype).itemsize
    ob = jnp.dtype(out_dtype).itemsize
    wb = jnp.dtype(mat_dtype).itemsize
    working = 2 * (H * H + H * Lp) * wb      # W1, W2 (worst-case double-buffered)
    working += 2 * (H + Lp) * 4              # biases (f32)
    working += 3 * tm_eff * H * xb           # x tiles (up to 3-deep pipeline)
    working += 2 * tm_eff * Lp * ob          # out tiles (double-buffered)
    cap = _vmem_capacity_bytes()
    vmem_limit = max(int(1.25 * working), 16 * 1024 * 1024)
    vmem_limit = min(vmem_limit, int(0.9 * cap))
    vmem_limit = max(vmem_limit, min(cap, int(1.1 * working)))

    kernel = _make_kernel(_bf16_epilogue_ok())

    cost = pl.CostEstimate(
        flops=2 * M * H * (H + Lp),
        transcendentals=M * H,
        bytes_accessed=(M * H * xb + (H * H + H * Lp) * wb
                        + (H + Lp) * 4 + M * Lp * ob),
    )

    def build(use_pipeline_mode):
        def spec(shape, index_map, buffers):
            if use_pipeline_mode and buffers is not None:
                return pl.BlockSpec(shape, index_map,
                                    pipeline_mode=pl.Buffered(buffers))
            return pl.BlockSpec(shape, index_map)

        return pl.pallas_call(
            kernel,
            out_shape=jax.ShapeDtypeStruct((M, Lp), out_dtype),
            grid=grid,
            in_specs=[
                spec((tm_eff, H), lambda i: (i, 0), 3),   # streamed x tiles
                spec((H, H), lambda i: (0, 0), 1),        # W1 resident in VMEM
                spec((1, H), lambda i: (0, 0), 1),        # b1 resident
                spec((H, Lp), lambda i: (0, 0), 1),       # W2 resident
                spec((1, Lp), lambda i: (0, 0), 1),       # b2 resident
            ],
            out_specs=pl.BlockSpec((tm_eff, Lp), lambda i: (i, 0)),
            compiler_params=pltpu.CompilerParams(
                dimension_semantics=("parallel",),        # shard M across TCs (v7x)
                vmem_limit_bytes=vmem_limit,
            ),
            cost_estimate=cost,
        )

    args = (x2d, w1b, b1p, w2p, b2p)
    if hasattr(pl, "Buffered"):
        try:
            out2d = build(True)(*args)
        except Exception:
            # pipeline_mode / Buffered not supported in this jax build — the
            # hint is perf-only, so fall back to default (double) buffering.
            out2d = build(False)(*args)
    else:
        out2d = build(False)(*args)

    return out2d[:, :L].reshape(B, S, L)


if __name__ == "__main__":
    batch, seq, hidden, num_labels = 2, 8, 32, 4

    key = jax.random.PRNGKey(0)
    kx, kw1, kb1, kw2, kb2 = jax.random.split(key, 5)

    x = jax.random.normal(kx, (batch, seq, hidden), dtype=jnp.float32)

    # Parameters stored as (in, out) — i.e. W.T of the PyTorch nn.Linear
    # weight — so the kernel computes x @ W_t + b.
    w1 = jax.random.normal(kw1, (hidden, hidden), dtype=jnp.float32) * 0.02
    b1 = jax.random.normal(kb1, (hidden,), dtype=jnp.float32) * 0.02
    w2 = jax.random.normal(kw2, (hidden, num_labels), dtype=jnp.float32) * 0.02
    b2 = jax.random.normal(kb2, (num_labels,), dtype=jnp.float32) * 0.02

    out = bert_mlp(x, w1, b1, w2, b2)
    out = jax.block_until_ready(out)

    # Reference check in plain JAX (same math as the PyTorch module).
    ref = jnp.tanh(x @ w1 + b1) @ w2 + b2
    assert out.shape == (batch, seq, num_labels)
    # bf16 MXU operands (f32 accumulation) => looser tolerance than pure f32.
    assert jnp.allclose(out, ref, atol=1e-2, rtol=1e-2), \
        float(jnp.max(jnp.abs(out - ref)))

    print("KERNEL_OK")
</pallas_src>

<mosaic_0001>
module attributes {stable_mosaic.version = 11 : i64} {
  func.func @kernel(%arg0: i32, %arg1: memref<16x32xf32, #tpu.memory_space<vmem>>, %arg2: memref<32x32xbf16, #tpu.memory_space<vmem>>, %arg3: memref<1x32xf32, #tpu.memory_space<vmem>>, %arg4: memref<32x128xbf16, #tpu.memory_space<vmem>>, %arg5: memref<1x128xf32, #tpu.memory_space<vmem>>, %arg6: memref<16x128xf32, #tpu.memory_space<vmem>>) attributes {dimension_semantics = [#tpu.dimension_semantics<parallel>], iteration_bounds = array<i64: 1>, scalar_prefetch = 0 : i64, scratch_operands = 0 : i64, tpu.core_type = #tpu.core_type<tc>, window_params = [{transform_indices = @transform_0, window_bounds = array<i64: 16, 32>}, {pipeline_mode = #tpu.pipeline_mode<synchronous>, transform_indices = @transform_1, window_bounds = array<i64: 32, 32>}, {pipeline_mode = #tpu.pipeline_mode<synchronous>, transform_indices = @transform_2, window_bounds = array<i64: 1, 32>}, {pipeline_mode = #tpu.pipeline_mode<synchronous>, transform_indices = @transform_3, window_bounds = array<i64: 32, 128>}, {pipeline_mode = #tpu.pipeline_mode<synchronous>, transform_indices = @transform_4, window_bounds = array<i64: 1, 128>}, {transform_indices = @transform_5, window_bounds = array<i64: 16, 128>}]} {
    %c0 = arith.constant 0 : index
    %c0_0 = arith.constant 0 : index
    %0 = vector.load %arg1[%c0, %c0_0] : memref<16x32xf32, #tpu.memory_space<vmem>>, vector<16x32xf32>
    %1 = arith.truncf %0 : vector<16x32xf32> to vector<16x32xbf16>
    %c0_1 = arith.constant 0 : index
    %c0_2 = arith.constant 0 : index
    %2 = vector.load %arg2[%c0_1, %c0_2] : memref<32x32xbf16, #tpu.memory_space<vmem>>, vector<32x32xbf16>
    %cst = arith.constant dense<0.000000e+00> : vector<16x32xf32>
    %3 = tpu.matmul %1, %2, %cst {dimension_numbers = #tpu.dot_dimension_numbers<[1], [0], [0], [1], [0, 0, 1, 1], [], []>} : vector<16x32xbf16>, vector<32x32xbf16>, vector<16x32xf32> -> vector<16x32xf32>
    %c0_3 = arith.constant 0 : index
    %c0_4 = arith.constant 0 : index
    %4 = vector.load %arg3[%c0_3, %c0_4] : memref<1x32xf32, #tpu.memory_space<vmem>>, vector<1x32xf32>
    %5 = vector.broadcast %4 : vector<1x32xf32> to vector<16x32xf32>
    %6 = arith.addf %3, %5 : vector<16x32xf32>
    %7 = arith.truncf %6 : vector<16x32xf32> to vector<16x32xbf16>
    %8 = math.tanh %7 : vector<16x32xbf16>
    %c0_5 = arith.constant 0 : index
    %c0_6 = arith.constant 0 : index
    %9 = vector.load %arg4[%c0_5, %c0_6] : memref<32x128xbf16, #tpu.memory_space<vmem>>, vector<32x128xbf16>
    %cst_7 = arith.constant dense<0.000000e+00> : vector<16x128xf32>
    %10 = tpu.matmul %8, %9, %cst_7 {dimension_numbers = #tpu.dot_dimension_numbers<[1], [0], [0], [1], [0, 0, 1, 1], [], []>} : vector<16x32xbf16>, vector<32x128xbf16>, vector<16x128xf32> -> vector<16x128xf32>
    %c0_8 = arith.constant 0 : index
    %c0_9 = arith.constant 0 : index
    %11 = vector.load %arg5[%c0_8, %c0_9] : memref<1x128xf32, #tpu.memory_space<vmem>>, vector<1x128xf32>
    %12 = vector.broadcast %11 : vector<1x128xf32> to vector<16x128xf32>
    %13 = arith.addf %10, %12 : vector<16x128xf32>
    %c0_10 = arith.constant 0 : index
    %c0_11 = arith.constant 0 : index
    %14 = vector.load %arg6[%c0_10, %c0_11] : memref<16x128xf32, #tpu.memory_space<vmem>>, vector<16x128xf32>
    tpu.vector_store %arg6[%c0_10, %c0_11], %13 {strides = array<i32>} : memref<16x128xf32, #tpu.memory_space<vmem>>, vector<16x128xf32>,
    return
  }
  func.func @transform_0(%arg0: i32) -> (i32, i32) {
    %c0_i32 = arith.constant 0 : i32
    %c0_i32_0 = arith.constant 0 : i32
    return %arg0, %c0_i32 : i32, i32
  }
  func.func @transform_1(%arg0: i32) -> (i32, i32) {
    %c0_i32 = arith.constant 0 : i32
    %c0_i32_0 = arith.constant 0 : i32
    %c0_i32_1 = arith.constant 0 : i32
    return %c0_i32, %c0_i32_0 : i32, i32
  }
  func.func @transform_2(%arg0: i32) -> (i32, i32) {
    %c0_i32 = arith.constant 0 : i32
    %c0_i32_0 = arith.constant 0 : i32
    %c0_i32_1 = arith.constant 0 : i32
    return %c0_i32, %c0_i32_0 : i32, i32
  }
  func.func @transform_3(%arg0: i32) -> (i32, i32) {
    %c0_i32 = arith.constant 0 : i32
    %c0_i32_0 = arith.constant 0 : i32
    %c0_i32_1 = arith.constant 0 : i32
    return %c0_i32, %c0_i32_0 : i32, i32
  }
  func.func @transform_4(%arg0: i32) -> (i32, i32) {
    %c0_i32 = arith.constant 0 : i32
    %c0_i32_0 = arith.constant 0 : i32
    %c0_i32_1 = arith.constant 0 : i32
    return %c0_i32, %c0_i32_0 : i32, i32
  }
  func.func @transform_5(%arg0: i32) -> (i32, i32) {
    %c0_i32 = arith.constant 0 : i32
    %c0_i32_0 = arith.constant 0 : i32
    return %arg0, %c0_i32 : i32, i32
  }
}

</mosaic_0001>

<llo_original>
// kernel: tpu_custom_call.1
$region0: #{tpu_custom_call.1}
  #allocation0 [shape = 'u32[]', space=smem, size = 0x4, offset = 0x4, fixed_abs, tag = 'smem constant byte address 0x4 - core index']
  #allocation1 [shape = 'u32[144,128]{1,0:T(1,128)}', space=vmem, size = 0x12000, scoped, tag = 'internal scratch']
  %s0 = inlined_call_operand.hbm [shape: f32[16,32], index: 0, kind: input, shape index: {}]
  %s1 = inlined_call_operand.hbm [shape: bf16[32,32], index: 1, kind: input, shape index: {}]
  %s2 = inlined_call_operand.vmem [shape: f32[1,32], index: 2, kind: input, shape index: {}]
  %s3 = inlined_call_operand.hbm [shape: bf16[32,128], index: 3, kind: input, shape index: {}]
  %s4 = inlined_call_operand.vmem [shape: f32[1,128], index: 4, kind: input, shape index: {}]
  %s5 = inlined_call_operand.hbm [shape: f32[16,128], index: 5, kind: output, shape index: {}]
  %s6 = sld [smem:[#allocation0]]
  $region42: #{tpu_custom_call.1} parent=0
    _
  %s8 = ssub.s32 1, %s6
  %s9 = scalar_select 0, %s8, %s6
  $region1: #{tpu_custom_call.1} parent=0
    #allocation2 [shape = 'u8[8192]{0}', space=vmem, size = 0x2000, scoped, tag = 'input window, operand 0, single buffered']
    #allocation3 [shape = 's32[1]{0}', space=sflag, size = 0x4, scoped, tag = 'scoped memory for tpu_custom_call.1']
    #allocation4 [shape = 's32[1]{0}', space=sflag, size = 0x4, scoped, tag = 'scoped memory for tpu_custom_call.1']
    #allocation5 [shape = 'u8[8192]{0}', space=vmem, size = 0x2000, scoped, tag = 'input window, operand 1, single buffered']
    #allocation6 [shape = 's32[1]{0}', space=sflag, size = 0x4, scoped, tag = 'scoped memory for tpu_custom_call.1']
    #allocation7 [shape = 'u8[8192]{0}', space=vmem, size = 0x2000, scoped, tag = 'input window, operand 3, single buffered']
    #allocation8 [shape = 'u8[8192]{0}', space=vmem, size = 0x2000, scoped, tag = 'output window, operand 0, single buffered']
    %10 = vsyncpa [#allocation3], 0
    %11 = vsyncpa [#allocation6], 0
    %12 = vsyncpa [#allocation4], 0
    // Predicated region
    $region2: #{tpu_custom_call.1} parent=1 // pred_check
      _
    $region3: #{tpu_custom_call.1} parent=1 // pred_check_branch
      %14 = sbr.rel (0) target = $region5
    $region4: #{tpu_custom_call.1} parent=1 // pred_region
      %s16 = ssub.s32 256, 256
      %17 = vsyncadd [#allocation3], %s16
      %s18 = sshll.u32 [#allocation2], 4
      %s19 = int_to_ptr.vmem [resolvable:$true] %s18
      %24 = dma.hbm_to_vmem [thread:$0]  %s0, 256, %s19, [#allocation3], 128, 128, 8
    $region5: #{tpu_custom_call.1} parent=1 // pred_fallthru
      _
    // Predicated region
    $region6: #{tpu_custom_call.1} parent=1 // pred_check
      _
    $region7: #{tpu_custom_call.1} parent=1 // pred_check_branch
      %26 = sbr.rel (0) target = $region9
    $region8: #{tpu_custom_call.1} parent=1 // pred_region
      %s28 = ssub.s32 256, 256
      %29 = vsyncadd [#allocation6], %s28
      %s30 = sshll.u32 [#allocation5], 4
      %s31 = int_to_ptr.vmem [resolvable:$true] %s30
      %36 = dma.hbm_to_vmem [thread:$0]  %s1, 256, %s31, [#allocation6], 64, 64, 4
    $region9: #{tpu_custom_call.1} parent=1 // pred_fallthru
      _
    // Predicated region
    $region10: #{tpu_custom_call.1} parent=1 // pred_check
      _
    $region11: #{tpu_custom_call.1} parent=1 // pred_check_branch
      %38 = sbr.rel (0) target = $region13
    $region12: #{tpu_custom_call.1} parent=1 // pred_region
      _
    $region13: #{tpu_custom_call.1} parent=1 // pred_fallthru
      _
    // Predicated region
    $region14: #{tpu_custom_call.1} parent=1 // pred_check
      _
    $region15: #{tpu_custom_call.1} parent=1 // pred_check_branch
      %40 = sbr.rel (0) target = $region17
    $region16: #{tpu_custom_call.1} parent=1 // pred_region
      %s42 = ssub.s32 256, 256
      %43 = vsyncadd [#allocation6], %s42
      %s44 = sshll.u32 [#allocation7], 4
      %s45 = int_to_ptr.vmem [resolvable:$true] %s44
      %50 = dma.hbm_to_vmem [thread:$0]  %s3, 256, %s45, [#allocation6], 64, 64, 4
    $region17: #{tpu_custom_call.1} parent=1 // pred_fallthru
      _
    // Predicated region
    $region18: #{tpu_custom_call.1} parent=1 // pred_check
      _
    $region19: #{tpu_custom_call.1} parent=1 // pred_check_branch
      %52 = sbr.rel (0) target = $region21
    $region20: #{tpu_custom_call.1} parent=1 // pred_region
      _
    $region21: #{tpu_custom_call.1} parent=1 // pred_fallthru
      _
    // Predicated region
    $region22: #{tpu_custom_call.1} parent=1 // pred_check
      _
    $region23: #{tpu_custom_call.1} parent=1 // pred_check_branch
      %54 = sbr.rel (0) target = $region25
    $region24: #{tpu_custom_call.1} parent=1 // pred_region
      %55 = dma.done [#allocation3], 256
    $region25: #{tpu_custom_call.1} parent=1 // pred_fallthru
      _
    // Predicated region
    $region26: #{tpu_custom_call.1} parent=1 // pred_check
      _
    $region27: #{tpu_custom_call.1} parent=1 // pred_check_branch
      %57 = sbr.rel (0) target = $region29
    $region28: #{tpu_custom_call.1} parent=1 // pred_region
      %58 = dma.done [#allocation6], 256
    $region29: #{tpu_custom_call.1} parent=1 // pred_fallthru
      _
    // Predicated region
    $region30: #{tpu_custom_call.1} parent=1 // pred_check
      _
    $region31: #{tpu_custom_call.1} parent=1 // pred_check_branch
      %60 = sbr.rel (0) target = $region33
    $region32: #{tpu_custom_call.1} parent=1 // pred_region
      %61 = dma.done [#allocation6], 256
    $region33: #{tpu_custom_call.1} parent=1 // pred_fallthru
      _
    %v63 = vld [vmem:[#allocation2] sm:$0xff]
    %v64 = vld [vmem:[#allocation2 + $0x8] sm:$0xff]
    %v65 = vpack.c.bf16 %v64, %v63
    %v66 = vld [vmem:[#allocation5] sm:$0xf]
    %v67 = vld [vmem:[#allocation5 + $0x4] sm:$0xf]
    %v68 = vld [vmem:[#allocation5 + $0x8] sm:$0xf]
    %v69 = vld [vmem:[#allocation5 + $0xc] sm:$0xf]
    %v70 = vld [vmem:[%s2] sm:$0x1]
    %v72 = vlaneseq
    %v73 = vshrl.u32 %v72, 7
    %v74 = vsub.s32 0, %v73
    %v75 = vrot.slane %v70, %v74
    %v81 = vunpack.c.l.b16 %v66
    %v82 = vunpack.c.l.b16 %v67
    %v83 = vunpack.c.l.b16 %v68
    %v84 = vunpack.c.l.b16 %v69
    %v85 = vpack.c.b16 %v82, %v81
    %v86 = vpack.c.b16 %v84, %v83
    %vm89 = vcmask 261120
    %v91 = vsel %vm89, %v65, 0
    %93 = vmatprep.subr.bf16.mxu0 0
    %94 = vmatpush1.bf16.msra.mxu0 %v85
    %95 = vmatprep.subr.bf16.mxu0 0
    %96 = vmatpush1.bf16.msra.mxu0 %v86
    %97 = vmatprep.subr.bf16.mxu0 0
    %98 = vmatpush1.bf16.msra.mxu0 0
    %99 = vmatprep.subr.bf16.mxu0 0
    %100 = vmatpush1.bf16.msra.mxu0 0
    %101 = vmatprep.subr.bf16.mxu0 0
    %102 = vmatpush1.bf16.msra.mxu0 0
    %103 = vmatprep.subr.bf16.mxu0 0
    %104 = vmatpush1.bf16.msra.mxu0 0
    %105 = vmatprep.subr.bf16.mxu0 0
    %106 = vmatpush1.bf16.msra.mxu0 0
    %107 = vmatprep.subr.bf16.mxu0 0
    %108 = vmatpush1.bf16.msra.mxu0 0
    %109 = vmatprep.subr.bf16.mxu0 0
    %110 = vmatpush1.bf16.msra.mxu0 0
    %111 = vmatprep.subr.bf16.mxu0 0
    %112 = vmatpush1.bf16.msra.mxu0 0
    %113 = vmatprep.subr.bf16.mxu0 0
    %114 = vmatpush1.bf16.msra.mxu0 0
    %115 = vmatprep.subr.bf16.mxu0 0
    %116 = vmatpush1.bf16.msra.mxu0 0
    %117 = vmatprep.subr.bf16.mxu0 0
    %118 = vmatpush1.bf16.msra.mxu0 0
    %119 = vmatprep.subr.bf16.mxu0 0
    %120 = vmatpush1.bf16.msra.mxu0 0
    %121 = vmatprep.subr.bf16.mxu0 0
    %122 = vmatpush1.bf16.msra.mxu0 0
    %123 = vmatprep.subr.bf16.mxu0 0
    %124 = vmatpush1.bf16.msra.mxu0 0
    %125 = vmatprep.mubr.bf16.mxu0 0
    %126 = vmatmul.mubr.bf16.gmra.mrb[0].mxu0 %v91
    %v127 = vpop.f32.mrb[0].mxu0
    %v128 = vadd.f32 %v75, %v127
    %v129 = vpop.f32.mrb[0].mxu0
    %v130 = vpop.f32.mrb[0].mxu0
    %v131 = vadd.f32 %v75, %v130
    %v132 = vpop.f32.mrb[0].mxu0
    %133 = vdwg.mxu0
    %v134 = vpack.c.bf16 %v131, %v128
    %v135 = vtanh.bf16.pop %v134
    %v136 = vld [vmem:[#allocation7] sm:$0xf]
    %v137 = vld [vmem:[#allocation7 + $0x4] sm:$0xf]
    %v138 = vld [vmem:[#allocation7 + $0x8] sm:$0xf]
    %v139 = vld [vmem:[#allocation7 + $0xc] sm:$0xf]
    %v140 = vld [vmem:[%s4] sm:$0x1]
    %v142 = vlaneseq
    %v143 = vshrl.u32 %v142, 7
    %v144 = vsub.s32 0, %v143
    %v145 = vrot.slane %v140, %v144
    %v151 = vunpack.c.l.b16 %v136
    %v152 = vunpack.c.l.b16 %v137
    %v153 = vunpack.c.l.b16 %v138
    %v154 = vunpack.c.l.b16 %v139
    %v155 = vpack.c.b16 %v152, %v151
    %v156 = vpack.c.b16 %v154, %v153
    %v160 = vsel %vm89, %v135, 0
    %162 = vmatprep.subr.bf16.mxu0 0
    %163 = vmatpush1.bf16.msra.mxu0 %v155
    %164 = vmatprep.subr.bf16.mxu0 0
    %165 = vmatpush1.bf16.msra.mxu0 %v156
    %166 = vmatprep.subr.bf16.mxu0 0
    %167 = vmatpush1.bf16.msra.mxu0 0
    %168 = vmatprep.subr.bf16.mxu0 0
    %169 = vmatpush1.bf16.msra.mxu0 0
    %170 = vmatprep.subr.bf16.mxu0 0
    %171 = vmatpush1.bf16.msra.mxu0 0
    %172 = vmatprep.subr.bf16.mxu0 0
    %173 = vmatpush1.bf16.msra.mxu0 0
    %174 = vmatprep.subr.bf16.mxu0 0
    %175 = vmatpush1.bf16.msra.mxu0 0
    %176 = vmatprep.subr.bf16.mxu0 0
    %177 = vmatpush1.bf16.msra.mxu0 0
    %178 = vmatprep.subr.bf16.mxu0 0
    %179 = vmatpush1.bf16.msra.mxu0 0
    %180 = vmatprep.subr.bf16.mxu0 0
    %181 = vmatpush1.bf16.msra.mxu0 0
    %182 = vmatprep.subr.bf16.mxu0 0
    %183 = vmatpush1.bf16.msra.mxu0 0
    %184 = vmatprep.subr.bf16.mxu0 0
    %185 = vmatpush1.bf16.msra.mxu0 0
    %186 = vmatprep.subr.bf16.mxu0 0
    %187 = vmatpush1.bf16.msra.mxu0 0
    %188 = vmatprep.subr.bf16.mxu0 0
    %189 = vmatpush1.bf16.msra.mxu0 0
    %190 = vmatprep.subr.bf16.mxu0 0
    %191 = vmatpush1.bf16.msra.mxu0 0
    %192 = vmatprep.subr.bf16.mxu0 0
    %193 = vmatpush1.bf16.msra.mxu0 0
    %194 = vmatprep.mubr.bf16.mxu0 0
    %195 = vmatmul.mubr.bf16.gmra.mrb[0].mxu0 %v160
    %v196 = vpop.f32.mrb[0].mxu0
    %v197 = vadd.f32 %v145, %v196
    %v198 = vpop.f32.mrb[0].mxu0
    %v199 = vpop.f32.mrb[0].mxu0
    %v200 = vadd.f32 %v145, %v199
    %v201 = vpop.f32.mrb[0].mxu0
    %202 = vdwg.mxu0
    %203 = vst [vmem:[#allocation8] sm:$0xff] %v197
    %204 = vst [vmem:[#allocation8 + $0x8] sm:$0xff] %v200
    // Predicated region
    $region34: #{tpu_custom_call.1} parent=1 // pred_check
      _
    $region35: #{tpu_custom_call.1} parent=1 // pred_check_branch
      %206 = sbr.rel (0) target = $region37
    $region36: #{tpu_custom_call.1} parent=1 // pred_region
      %s208 = ssub.s32 256, 256
      %209 = vsyncadd [#allocation4], %s208
      %s210 = sshll.u32 [#allocation8], 4
      %s211 = int_to_ptr.vmem [resolvable:$true] %s210
      %216 = dma.vmem_to_hbm [thread:$0]  %s211, 256, %s5, [#allocation4], 128, 128, 8
    $region37: #{tpu_custom_call.1} parent=1 // pred_fallthru
      _
    // Predicated region
    $region38: #{tpu_custom_call.1} parent=1 // pred_check
      _
    $region39: #{tpu_custom_call.1} parent=1 // pred_check_branch
      %218 = sbr.rel (0) target = $region41
    $region40: #{tpu_custom_call.1} parent=1 // pred_region
      %219 = dma.done [#allocation4], 256
    $region41: #{tpu_custom_call.1} parent=1 // pred_fallthru
      _
    %220 = vsyncpa [#allocation3], 1
    %221 = vsyncpa [#allocation6], 1
    %222 = vsyncpa [#allocation4], 1

</llo_original>
